<compile_context>
chip_gen: v7x
topology: tpu7x:2x2x1
jax: 0.10.0
libtpu: 0.0.40
codegen_flags: <defaults>
</compile_context>

<pallas_src>
import jax
import jax.numpy as jnp
from jax.experimental import pallas as pl
from jax.experimental.pallas import tpu as pltpu


def _round_up(a, b):
    return (a + b - 1) // b * b


def _native_sublanes(dtype):
    # 8 sublanes of 32 bits; sub-32-bit dtypes pack along sublanes.
    return max(8, 32 // jnp.dtype(dtype).itemsize)


def _vmem_capacity_bytes():
    try:
        return int(pltpu.get_tpu_info().vmem_capacity_bytes)
    except Exception:
        return 64 << 20  # conservative fallback (fits v7x)


# --------------------------- kernel bodies ----------------------------------

def _mlp_kernel_f32_out(x_ref, wg_ref, wu_ref, wd_ref, o_ref):
    """f32 output: accumulate directly into the k-resident output tile."""
    k = pl.program_id(1)

    @pl.when(k == 0)
    def _init():
        o_ref[...] = jnp.zeros_like(o_ref)

    x = x_ref[...]
    gate = jnp.dot(x, wg_ref[...], preferred_element_type=jnp.float32)
    up = jnp.dot(x, wu_ref[...], preferred_element_type=jnp.float32)
    h = (gate * jax.nn.sigmoid(gate)) * up            # SwiGLU in f32
    o_ref[...] += jnp.dot(h.astype(wd_ref.dtype), wd_ref[...],
                          preferred_element_type=jnp.float32)


def _mlp_kernel_acc(x_ref, wg_ref, wu_ref, wd_ref, o_ref, acc_ref):
    """Narrow output dtype: f32 VMEM accumulator, single cast at the last k."""
    k = pl.program_id(1)

    @pl.when(k == 0)
    def _init():
        acc_ref[...] = jnp.zeros_like(acc_ref)

    x = x_ref[...]
    gate = jnp.dot(x, wg_ref[...], preferred_element_type=jnp.float32)
    up = jnp.dot(x, wu_ref[...], preferred_element_type=jnp.float32)
    h = (gate * jax.nn.sigmoid(gate)) * up
    acc_ref[...] += jnp.dot(h.astype(wd_ref.dtype), wd_ref[...],
                            preferred_element_type=jnp.float32)

    @pl.when(k == pl.num_programs(1) - 1)
    def _finalize():
        o_ref[...] = acc_ref[...].astype(o_ref.dtype)


# ------------------------------ wrapper --------------------------------------

def qwen3_mlp(x, w_gate, w_up, w_down, *, tm=None, ti=None):
    """x: (T, H) tokens; w_gate/w_up: (H, I); w_down: (I, H). Returns (T, H)."""
    T, H = x.shape
    Hg, I = w_gate.shape
    assert Hg == H and w_up.shape == (H, I) and w_down.shape == (I, H)

    out_dtype = x.dtype
    use_acc = jnp.dtype(out_dtype) != jnp.dtype(jnp.float32)

    x_bytes = jnp.dtype(x.dtype).itemsize
    w_bytes = jnp.dtype(w_gate.dtype).itemsize
    out_bytes = jnp.dtype(out_dtype).itemsize

    # --- per-chip defaults and VMEM budget ---------------------------------
    vmem_cap = _vmem_capacity_bytes()
    if vmem_cap >= (128 << 20):           # v5e / v6e: 128 MiB VMEM
        tm_default, ti_default, budget = 768, 512, 100 << 20
    else:                                 # v7x: 64 MiB VMEM, leave headroom
        tm_default, ti_default, budget = 512, 512, 52 << 20
    tm = tm_default if tm is None else tm
    ti = ti_default if ti is None else ti

    # --- token tiling: clamp to T rounded up to the native sublane count ---
    sub = _native_sublanes(x.dtype)
    tm_eff = min(_round_up(tm, sub), _round_up(T, sub))

    # --- intermediate (reduction) tiling ------------------------------------
    if I <= ti:
        ti_eff = I
    else:
        ti_eff = max(128, ti - (ti % 128))  # multiple of 128 when tiling I

    def _tile_bytes(tm_, ti_):
        return (2 * tm_ * H * x_bytes            # x tile (double-buffered)
                + 2 * H * ti_ * w_bytes * 2      # gate + up weight slices
                + 2 * ti_ * H * w_bytes          # down weight slice
                + 2 * tm_ * H * out_bytes        # output tile
                + (tm_ * H * 4 if use_acc else 0))

    # Auto-shrink ti then tm until the double-buffered footprint fits the
    # per-chip budget (with headroom for compiler internals).
    target = budget - (6 << 20)
    while (_tile_bytes(tm_eff, ti_eff) > target and ti_eff > 128
           and (ti_eff // 2) % 128 == 0):
        ti_eff //= 2
    while _tile_bytes(tm_eff, ti_eff) > target and tm_eff > sub:
        tm_eff = max(sub, _round_up(tm_eff // 2, sub))

    Tp = _round_up(T, tm_eff)
    Ip = _round_up(I, ti_eff)
    nk = Ip // ti_eff

    xp = jnp.pad(x, ((0, Tp - T), (0, 0))) if Tp != T else x
    wg_p, wu_p, wd_p = w_gate, w_up, w_down
    if Ip != I:
        wg_p = jnp.pad(w_gate, ((0, 0), (0, Ip - I)))
        wu_p = jnp.pad(w_up, ((0, 0), (0, Ip - I)))
        wd_p = jnp.pad(w_down, ((0, Ip - I), (0, 0)))

    tile_bytes = _tile_bytes(tm_eff, ti_eff)
    vmem_limit = min(budget, max(32 << 20, tile_bytes + (6 << 20)))

    # Weights are re-streamed once per token tile.
    n_token_tiles = Tp // tm_eff
    cost = pl.CostEstimate(
        flops=6 * T * H * I,                       # gate + up + down matmuls
        transcendentals=T * I,                     # sigmoid
        bytes_accessed=(Tp * H * x_bytes
                        + n_token_tiles * (2 * H * Ip + Ip * H) * w_bytes
                        + Tp * H * out_bytes),
    )

    kernel = _mlp_kernel_acc if use_acc else _mlp_kernel_f32_out
    scratch = ([pltpu.VMEM((tm_eff, H), jnp.float32)] if use_acc else [])

    out_p = pl.pallas_call(
        kernel,
        out_shape=jax.ShapeDtypeStruct((Tp, H), out_dtype),
        grid_spec=pltpu.PrefetchScalarGridSpec(
            num_scalar_prefetch=0,
            grid=(Tp // tm_eff, nk),
            in_specs=[
                pl.BlockSpec((tm_eff, H), lambda i, k: (i, 0)),     # x tile
                pl.BlockSpec((H, ti_eff), lambda i, k: (0, k)),     # gate slice
                pl.BlockSpec((H, ti_eff), lambda i, k: (0, k)),     # up slice
                pl.BlockSpec((ti_eff, H), lambda i, k: (k, 0)),     # down slice
            ],
            out_specs=pl.BlockSpec((tm_eff, H), lambda i, k: (i, 0)),
            scratch_shapes=scratch,
        ),
        compiler_params=pltpu.CompilerParams(
            dimension_semantics=("parallel", "arbitrary"),
            vmem_limit_bytes=int(vmem_limit),
        ),
        cost_estimate=cost,
    )(xp, wg_p, wu_p, wd_p)

    return out_p[:T] if Tp != T else out_p


def qwen3_mlp_ref(x, w_gate, w_up, w_down):
    x = x.astype(jnp.float32)
    w_gate = w_gate.astype(jnp.float32)
    w_up = w_up.astype(jnp.float32)
    w_down = w_down.astype(jnp.float32)
    gate = x @ w_gate
    up = x @ w_up
    return (gate * jax.nn.sigmoid(gate) * up) @ w_down


if __name__ == "__main__":
    key = jax.random.PRNGKey(0)

    # --- test 1: small module-consistent shapes (batch=2, seq=8, hidden=32,
    #             intermediate=64); single I-chunk, f32 direct-accumulate ----
    B, S, H, I = 2, 8, 32, 64
    kx, kg, ku, kd = jax.random.split(key, 4)
    x = jax.random.normal(kx, (B, S, H), dtype=jnp.float32)
    w_gate = jax.random.normal(kg, (H, I), dtype=jnp.float32) * 0.05
    w_up = jax.random.normal(ku, (H, I), dtype=jnp.float32) * 0.05
    w_down = jax.random.normal(kd, (I, H), dtype=jnp.float32) * 0.05

    x2d = x.reshape(B * S, H)
    out = qwen3_mlp(x2d, w_gate, w_up, w_down).reshape(B, S, H)
    jax.block_until_ready(out)
    ref = qwen3_mlp_ref(x2d, w_gate, w_up, w_down).reshape(B, S, H)
    assert jnp.allclose(out, ref, atol=1e-4, rtol=1e-4), "mismatch (test 1)"

    # --- test 2: ragged token count + multi-chunk I accumulation (f32) ------
    T2, H2, I2 = 13, 128, 256
    k2x, k2g, k2u, k2d = jax.random.split(jax.random.PRNGKey(1), 4)
    x2 = jax.random.normal(k2x, (T2, H2), dtype=jnp.float32)
    wg2 = jax.random.normal(k2g, (H2, I2), dtype=jnp.float32) * 0.05
    wu2 = jax.random.normal(k2u, (H2, I2), dtype=jnp.float32) * 0.05
    wd2 = jax.random.normal(k2d, (I2, H2), dtype=jnp.float32) * 0.05

    out2 = qwen3_mlp(x2, wg2, wu2, wd2, tm=256, ti=128)
    jax.block_until_ready(out2)
    ref2 = qwen3_mlp_ref(x2, wg2, wu2, wd2)
    assert out2.shape == (T2, H2)
    assert jnp.allclose(out2, ref2, atol=1e-4, rtol=1e-4), "mismatch (test 2)"

    # --- test 3: bf16 path (f32 VMEM accumulator + finalize cast) -----------
    T3, H3, I3 = 32, 128, 256
    k3x, k3g, k3u, k3d = jax.random.split(jax.random.PRNGKey(2), 4)
    x3 = jax.random.normal(k3x, (T3, H3), dtype=jnp.bfloat16)
    wg3 = (jax.random.normal(k3g, (H3, I3), dtype=jnp.float32) * 0.05).astype(jnp.bfloat16)
    wu3 = (jax.random.normal(k3u, (H3, I3), dtype=jnp.float32) * 0.05).astype(jnp.bfloat16)
    wd3 = (jax.random.normal(k3d, (I3, H3), dtype=jnp.float32) * 0.05).astype(jnp.bfloat16)

    out3 = qwen3_mlp(x3, wg3, wu3, wd3, ti=128)
    jax.block_until_ready(out3)
    ref3 = qwen3_mlp_ref(x3, wg3, wu3, wd3)
    assert out3.shape == (T3, H3)
    assert jnp.allclose(out3.astype(jnp.float32), ref3, atol=5e-2, rtol=5e-2), \
        "mismatch (test 3, bf16)"

    print("KERNEL_OK")
</pallas_src>

<mosaic_0001>
module attributes {stable_mosaic.version = 11 : i64} {
  func.func @_mlp_kernel_f32_out(%arg0: i32, %arg1: i32, %arg2: memref<16x32xf32, #tpu.memory_space<vmem>>, %arg3: memref<32x64xf32, #tpu.memory_space<vmem>>, %arg4: memref<32x64xf32, #tpu.memory_space<vmem>>, %arg5: memref<64x32xf32, #tpu.memory_space<vmem>>, %arg6: memref<16x32xf32, #tpu.memory_space<vmem>>) attributes {dimension_semantics = [#tpu.dimension_semantics<parallel>, #tpu.dimension_semantics<arbitrary>], iteration_bounds = array<i64: 1, 1>, scalar_prefetch = 0 : i64, scratch_operands = 0 : i64, tpu.core_type = #tpu.core_type<tc>, window_params = [{transform_indices = @transform_0, window_bounds = array<i64: 16, 32>}, {transform_indices = @transform_1, window_bounds = array<i64: 32, 64>}, {transform_indices = @transform_2, window_bounds = array<i64: 32, 64>}, {transform_indices = @transform_3, window_bounds = array<i64: 64, 32>}, {transform_indices = @transform_4, window_bounds = array<i64: 16, 32>}]} {
    %c0_i32 = arith.constant 0 : i32
    %0 = arith.cmpi eq, %arg1, %c0_i32 : i32
    %1 = arith.extui %0 : i1 to i32
    %c0_i32_0 = arith.constant 0 : i32
    %2 = arith.cmpi ne, %1, %c0_i32_0 : i32
    scf.if %2 {
      %cst_15 = arith.constant 0.000000e+00 : f32
      %20 = vector.broadcast %cst_15 : f32 to vector<16x32xf32>
      %c0_16 = arith.constant 0 : index
      %c0_17 = arith.constant 0 : index
      %21 = vector.load %arg6[%c0_16, %c0_17] : memref<16x32xf32, #tpu.memory_space<vmem>>, vector<16x32xf32>
      tpu.vector_store %arg6[%c0_16, %c0_17], %20 {strides = array<i32>} : memref<16x32xf32, #tpu.memory_space<vmem>>, vector<16x32xf32>,
    } else {
    }
    %c0 = arith.constant 0 : index
    %c0_1 = arith.constant 0 : index
    %3 = vector.load %arg2[%c0, %c0_1] : memref<16x32xf32, #tpu.memory_space<vmem>>, vector<16x32xf32>
    %c0_2 = arith.constant 0 : index
    %c0_3 = arith.constant 0 : index
    %4 = vector.load %arg3[%c0_2, %c0_3] : memref<32x64xf32, #tpu.memory_space<vmem>>, vector<32x64xf32>
    %cst = arith.constant dense<0.000000e+00> : vector<16x64xf32>
    %5 = tpu.matmul %3, %4, %cst {dimension_numbers = #tpu.dot_dimension_numbers<[1], [0], [0], [1], [0, 0, 1, 1], [], []>} : vector<16x32xf32>, vector<32x64xf32>, vector<16x64xf32> -> vector<16x64xf32>
    %c0_4 = arith.constant 0 : index
    %c0_5 = arith.constant 0 : index
    %6 = vector.load %arg4[%c0_4, %c0_5] : memref<32x64xf32, #tpu.memory_space<vmem>>, vector<32x64xf32>
    %cst_6 = arith.constant dense<0.000000e+00> : vector<16x64xf32>
    %7 = tpu.matmul %3, %6, %cst_6 {dimension_numbers = #tpu.dot_dimension_numbers<[1], [0], [0], [1], [0, 0, 1, 1], [], []>} : vector<16x32xf32>, vector<32x64xf32>, vector<16x64xf32> -> vector<16x64xf32>
    %8 = arith.negf %5 : vector<16x64xf32>
    %9 = math.exp %8 : vector<16x64xf32>
    %cst_7 = arith.constant 1.000000e+00 : f32
    %10 = vector.broadcast %cst_7 : f32 to vector<16x64xf32>
    %11 = arith.addf %10, %9 : vector<16x64xf32>
    %12 = arith.divf %10, %11 : vector<16x64xf32>
    %13 = arith.mulf %5, %12 : vector<16x64xf32>
    %14 = arith.mulf %13, %7 : vector<16x64xf32>
    %c0_8 = arith.constant 0 : index
    %c0_9 = arith.constant 0 : index
    %15 = vector.load %arg6[%c0_8, %c0_9] : memref<16x32xf32, #tpu.memory_space<vmem>>, vector<16x32xf32>
    %c0_10 = arith.constant 0 : index
    %c0_11 = arith.constant 0 : index
    %16 = vector.load %arg5[%c0_10, %c0_11] : memref<64x32xf32, #tpu.memory_space<vmem>>, vector<64x32xf32>
    %cst_12 = arith.constant dense<0.000000e+00> : vector<16x32xf32>
    %17 = tpu.matmul %14, %16, %cst_12 {dimension_numbers = #tpu.dot_dimension_numbers<[1], [0], [0], [1], [0, 0, 1, 1], [], []>} : vector<16x64xf32>, vector<64x32xf32>, vector<16x32xf32> -> vector<16x32xf32>
    %18 = arith.addf %15, %17 : vector<16x32xf32>
    %c0_13 = arith.constant 0 : index
    %c0_14 = arith.constant 0 : index
    %19 = vector.load %arg6[%c0_13, %c0_14] : memref<16x32xf32, #tpu.memory_space<vmem>>, vector<16x32xf32>
    tpu.vector_store %arg6[%c0_13, %c0_14], %18 {strides = array<i32>} : memref<16x32xf32, #tpu.memory_space<vmem>>, vector<16x32xf32>,
    return
  }
  func.func @transform_0(%arg0: i32, %arg1: i32) -> (i32, i32) {
    %c0_i32 = arith.constant 0 : i32
    %c0_i32_0 = arith.constant 0 : i32
    return %arg0, %c0_i32 : i32, i32
  }
  func.func @transform_1(%arg0: i32, %arg1: i32) -> (i32, i32) {
    %c0_i32 = arith.constant 0 : i32
    %c0_i32_0 = arith.constant 0 : i32
    return %c0_i32, %arg1 : i32, i32
  }
  func.func @transform_2(%arg0: i32, %arg1: i32) -> (i32, i32) {
    %c0_i32 = arith.constant 0 : i32
    %c0_i32_0 = arith.constant 0 : i32
    return %c0_i32, %arg1 : i32, i32
  }
  func.func @transform_3(%arg0: i32, %arg1: i32) -> (i32, i32) {
    %c0_i32 = arith.constant 0 : i32
    %c0_i32_0 = arith.constant 0 : i32
    return %arg1, %c0_i32 : i32, i32
  }
  func.func @transform_4(%arg0: i32, %arg1: i32) -> (i32, i32) {
    %c0_i32 = arith.constant 0 : i32
    %c0_i32_0 = arith.constant 0 : i32
    return %arg0, %c0_i32 : i32, i32
  }
}

</mosaic_0001>

<llo_original>
// kernel: tpu_custom_call.1
$region0: #{tpu_custom_call.1}
  #allocation0 [shape = 'u32[]', space=smem, size = 0x4, offset = 0x4, fixed_abs, tag = 'smem constant byte address 0x4 - core index']
  #allocation1 [shape = 'u32[144,128]{1,0:T(1,128)}', space=vmem, size = 0x12000, scoped, tag = 'internal scratch']
  %s0 = inlined_call_operand.vmem [shape: f32[16,32], index: 0, kind: input, shape index: {}]
  %s1 = inlined_call_operand.vmem [shape: f32[32,64], index: 1, kind: input, shape index: {}]
  %s2 = inlined_call_operand.vmem [shape: f32[32,64], index: 2, kind: input, shape index: {}]
  %s3 = inlined_call_operand.vmem [shape: f32[64,32], index: 3, kind: input, shape index: {}]
  %s4 = inlined_call_operand.hbm [shape: f32[16,32], index: 4, kind: output, shape index: {}]
  %s5 = sld [smem:[#allocation0]]
  $region30: #{tpu_custom_call.1} parent=0
    _
  %s7 = ssub.s32 1, %s5
  %s8 = scalar_select 0, %s7, %s5
  $region1: #{tpu_custom_call.1} parent=0
    #allocation2 [shape = 'u8[8192]{0}', space=vmem, size = 0x2000, scoped, tag = 'output window, operand 0, single buffered']
    #allocation3 [shape = 's32[1]{0}', space=sflag, size = 0x4, scoped, tag = 'scoped memory for tpu_custom_call.1']
    %9 = vsyncpa [#allocation3], 0
    // Predicated region
    $region2: #{tpu_custom_call.1} parent=1 // pred_check
      _
    $region3: #{tpu_custom_call.1} parent=1 // pred_check_branch
      %11 = sbr.rel (0) target = $region5
    $region4: #{tpu_custom_call.1} parent=1 // pred_region
      _
    $region5: #{tpu_custom_call.1} parent=1 // pred_fallthru
      _
    // Predicated region
    $region6: #{tpu_custom_call.1} parent=1 // pred_check
      _
    $region7: #{tpu_custom_call.1} parent=1 // pred_check_branch
      %13 = sbr.rel (0) target = $region9
    $region8: #{tpu_custom_call.1} parent=1 // pred_region
      _
    $region9: #{tpu_custom_call.1} parent=1 // pred_fallthru
      _
    // Predicated region
    $region10: #{tpu_custom_call.1} parent=1 // pred_check
      _
    $region11: #{tpu_custom_call.1} parent=1 // pred_check_branch
      %15 = sbr.rel (0) target = $region13
    $region12: #{tpu_custom_call.1} parent=1 // pred_region
      _
    $region13: #{tpu_custom_call.1} parent=1 // pred_fallthru
      _
    // Predicated region
    $region14: #{tpu_custom_call.1} parent=1 // pred_check
      _
    $region15: #{tpu_custom_call.1} parent=1 // pred_check_branch
      %17 = sbr.rel (0) target = $region17
    $region16: #{tpu_custom_call.1} parent=1 // pred_region
      _
    $region17: #{tpu_custom_call.1} parent=1 // pred_fallthru
      _
    %p18 = scmp.eq.s32.totalorder 0, 0
    // Predicated region
    $region18: #{tpu_custom_call.1} parent=1 // pred_check
      %p19 = pneg %p18
    $region19: #{tpu_custom_call.1} parent=1 // pred_check_branch
      %21 = sbr.rel (%p19) target = $region21
    $region20: #{tpu_custom_call.1} parent=1 // pred_region
      %vm22 = vcmask 261120
      %23 = vst.msk [vmem:[#allocation2] sm:$0xff] %vm22, 0.0
      %24 = vst.msk [vmem:[#allocation2 + $0x8] sm:$0xff] %vm22, 0.0
    $region21: #{tpu_custom_call.1} parent=1 // pred_fallthru
      _
    %v25 = vld [vmem:[%s0] sm:$0xff]
    %v26 = vld [vmem:[%s0 + $0x8] sm:$0xff]
    %v27 = vld [vmem:[%s1] sm:$0xff]
    %v28 = vld [vmem:[%s1 + $0x8] sm:$0xff]
    %v29 = vld [vmem:[%s1 + $0x10] sm:$0xff]
    %v30 = vld [vmem:[%s1 + $0x18] sm:$0xff]
    %vm31 = vcmask 261120
    %v33 = vsel %vm31, %v25, 0
    %v36 = vsel %vm31, %v26, 0
    %38 = vmatprep.subr.mxu0 0.0
    %39 = vmatpush1.msra.mxu0 %v27
    %40 = vmatprep.subr.mxu0 0.0
    %41 = vmatpush1.msra.mxu0 %v28
    %42 = vmatprep.subr.mxu0 0.0
    %43 = vmatpush1.msra.mxu0 %v29
    %44 = vmatprep.subr.mxu0 0.0
    %45 = vmatpush1.msra.mxu0 %v30
    %46 = vmatprep.subr.mxu0 0.0
    %47 = vmatpush1.msra.mxu0 0.0
    %48 = vmatprep.subr.mxu0 0.0
    %49 = vmatpush1.msra.mxu0 0.0
    %50 = vmatprep.subr.mxu0 0.0
    %51 = vmatpush1.msra.mxu0 0.0
    %52 = vmatprep.subr.mxu0 0.0
    %53 = vmatpush1.msra.mxu0 0.0
    %54 = vmatprep.subr.mxu0 0.0
    %55 = vmatpush1.msra.mxu0 0.0
    %56 = vmatprep.subr.mxu0 0.0
    %57 = vmatpush1.msra.mxu0 0.0
    %58 = vmatprep.subr.mxu0 0.0
    %59 = vmatpush1.msra.mxu0 0.0
    %60 = vmatprep.subr.mxu0 0.0
    %61 = vmatpush1.msra.mxu0 0.0
    %62 = vmatprep.subr.mxu0 0.0
    %63 = vmatpush1.msra.mxu0 0.0
    %64 = vmatprep.subr.mxu0 0.0
    %65 = vmatpush1.msra.mxu0 0.0
    %66 = vmatprep.subr.mxu0 0.0
    %67 = vmatpush1.msra.mxu0 0.0
    %68 = vmatprep.subr.mxu0 0.0
    %69 = vmatpush1.msra.mxu0 0.0
    %70 = vmatprep.subr.mxu0 0.0
    %71 = vmatpush1.msra.mxu0 0.0
    %72 = vmatprep.subr.mxu0 0.0
    %73 = vmatpush1.msra.mxu0 0.0
    %74 = vmatprep.subr.mxu0 0.0
    %75 = vmatpush1.msra.mxu0 0.0
    %76 = vmatprep.subr.mxu0 0.0
    %77 = vmatpush1.msra.mxu0 0.0
    %78 = vmatprep.subr.mxu0 0.0
    %79 = vmatpush1.msra.mxu0 0.0
    %80 = vmatprep.subr.mxu0 0.0
    %81 = vmatpush1.msra.mxu0 0.0
    %82 = vmatprep.subr.mxu0 0.0
    %83 = vmatpush1.msra.mxu0 0.0
    %84 = vmatprep.subr.mxu0 0.0
    %85 = vmatpush1.msra.mxu0 0.0
    %86 = vmatprep.subr.mxu0 0.0
    %87 = vmatpush1.msra.mxu0 0.0
    %88 = vmatprep.subr.mxu0 0.0
    %89 = vmatpush1.msra.mxu0 0.0
    %90 = vmatprep.subr.mxu0 0.0
    %91 = vmatpush1.msra.mxu0 0.0
    %92 = vmatprep.subr.mxu0 0.0
    %93 = vmatpush1.msra.mxu0 0.0
    %94 = vmatprep.subr.mxu0 0.0
    %95 = vmatpush1.msra.mxu0 0.0
    %96 = vmatprep.subr.mxu0 0.0
    %97 = vmatpush1.msra.mxu0 0.0
    %98 = vmatprep.subr.mxu0 0.0
    %99 = vmatpush1.msra.mxu0 0.0
    %100 = vmatprep.subr.mxu0 0.0
    %101 = vmatpush1.msra.mxu0 0.0
    %102 = vmatprep.mubr.f32.mxu0 0.0
    %103 = vmatmul.mubr.f32.gmra.mrb[0].mxu0 %v33
    %v104 = vpop.f32.mrb[0].mxu0
    %v105 = vadd.f32 0.0, %v104
    %v106 = vpop.f32.mrb[0].mxu0
    %107 = vmatprep.mubr.f32.mxu0 0.0
    %108 = vmatmul.mubr.f32.gmra.mrb[0].mxu0 %v36
    %v109 = vpop.f32.mrb[0].mxu0
    %v110 = vadd.f32 0.0, %v109
    %v111 = vpop.f32.mrb[0].mxu0
    %112 = vdwg.mxu0
    %v113 = vld [vmem:[%s2] sm:$0xff]
    %v114 = vld [vmem:[%s2 + $0x8] sm:$0xff]
    %v115 = vld [vmem:[%s2 + $0x10] sm:$0xff]
    %v116 = vld [vmem:[%s2 + $0x18] sm:$0xff]
    %117 = vmatprep.subr.mxu0 0.0
    %118 = vmatpush1.msra.mxu0 %v113
    %119 = vmatprep.subr.mxu0 0.0
    %120 = vmatpush1.msra.mxu0 %v114
    %121 = vmatprep.subr.mxu0 0.0
    %122 = vmatpush1.msra.mxu0 %v115
    %123 = vmatprep.subr.mxu0 0.0
    %124 = vmatpush1.msra.mxu0 %v116
    %125 = vmatprep.subr.mxu0 0.0
    %126 = vmatpush1.msra.mxu0 0.0
    %127 = vmatprep.subr.mxu0 0.0
    %128 = vmatpush1.msra.mxu0 0.0
    %129 = vmatprep.subr.mxu0 0.0
    %130 = vmatpush1.msra.mxu0 0.0
    %131 = vmatprep.subr.mxu0 0.0
    %132 = vmatpush1.msra.mxu0 0.0
    %133 = vmatprep.subr.mxu0 0.0
    %134 = vmatpush1.msra.mxu0 0.0
    %135 = vmatprep.subr.mxu0 0.0
    %136 = vmatpush1.msra.mxu0 0.0
    %137 = vmatprep.subr.mxu0 0.0
    %138 = vmatpush1.msra.mxu0 0.0
    %139 = vmatprep.subr.mxu0 0.0
    %140 = vmatpush1.msra.mxu0 0.0
    %141 = vmatprep.subr.mxu0 0.0
    %142 = vmatpush1.msra.mxu0 0.0
    %143 = vmatprep.subr.mxu0 0.0
    %144 = vmatpush1.msra.mxu0 0.0
    %145 = vmatprep.subr.mxu0 0.0
    %146 = vmatpush1.msra.mxu0 0.0
    %147 = vmatprep.subr.mxu0 0.0
    %148 = vmatpush1.msra.mxu0 0.0
    %149 = vmatprep.subr.mxu0 0.0
    %150 = vmatpush1.msra.mxu0 0.0
    %151 = vmatprep.subr.mxu0 0.0
    %152 = vmatpush1.msra.mxu0 0.0
    %153 = vmatprep.subr.mxu0 0.0
    %154 = vmatpush1.msra.mxu0 0.0
    %155 = vmatprep.subr.mxu0 0.0
    %156 = vmatpush1.msra.mxu0 0.0
    %157 = vmatprep.subr.mxu0 0.0
    %158 = vmatpush1.msra.mxu0 0.0
    %159 = vmatprep.subr.mxu0 0.0
    %160 = vmatpush1.msra.mxu0 0.0
    %161 = vmatprep.subr.mxu0 0.0
    %162 = vmatpush1.msra.mxu0 0.0
    %163 = vmatprep.subr.mxu0 0.0
    %164 = vmatpush1.msra.mxu0 0.0
    %165 = vmatprep.subr.mxu0 0.0
    %166 = vmatpush1.msra.mxu0 0.0
    %167 = vmatprep.subr.mxu0 0.0
    %168 = vmatpush1.msra.mxu0 0.0
    %169 = vmatprep.subr.mxu0 0.0
    %170 = vmatpush1.msra.mxu0 0.0
    %171 = vmatprep.subr.mxu0 0.0
    %172 = vmatpush1.msra.mxu0 0.0
    %173 = vmatprep.subr.mxu0 0.0
    %174 = vmatpush1.msra.mxu0 0.0
    %175 = vmatprep.subr.mxu0 0.0
    %176 = vmatpush1.msra.mxu0 0.0
    %177 = vmatprep.subr.mxu0 0.0
    %178 = vmatpush1.msra.mxu0 0.0
    %179 = vmatprep.subr.mxu0 0.0
    %180 = vmatpush1.msra.mxu0 0.0
    %181 = vmatprep.mubr.f32.mxu0 0.0
    %182 = vmatmul.mubr.f32.gmra.mrb[0].mxu0 %v33
    %v183 = vpop.f32.mrb[0].mxu0
    %v184 = vadd.f32 0.0, %v183
    %v185 = vpop.f32.mrb[0].mxu0
    %186 = vmatprep.mubr.f32.mxu0 0.0
    %187 = vmatmul.mubr.f32.gmra.mrb[0].mxu0 %v36
    %v188 = vpop.f32.mrb[0].mxu0
    %v189 = vadd.f32 0.0, %v188
    %v190 = vpop.f32.mrb[0].mxu0
    %191 = vdwg.mxu0
    %v192 = vxor.u32 %v105, 2147483648
    %v193 = vxor.u32 %v110, 2147483648
    %v194 = vmul.f32 %v192, 1.442695
    %v195 = vpow.pop %v194
    %v196 = vmul.f32 %v193, 1.442695
    %v197 = vpow.pop %v196
    %v198 = vadd.f32 %v195, 1.0
    %v199 = vadd.f32 %v197, 1.0
    %v200 = vrcp.pop %v198
    %v201 = vmul.f32 1.0, %v200
    %v202 = vrcp.pop %v199
    %v203 = vmul.f32 1.0, %v202
    %v204 = vmul.f32 %v105, %v201
    %v205 = vmul.f32 %v110, %v203
    %v206 = vmul.f32 %v204, %v184
    %v207 = vmul.f32 %v205, %v189
    %v208 = vld [vmem:[#allocation2] sm:$0xff]
    %v209 = vld [vmem:[#allocation2 + $0x8] sm:$0xff]
    %v210 = vld [vmem:[%s3] sm:$0xff]
    %v211 = vld [vmem:[%s3 + $0x8] sm:$0xff]
    %v212 = vld [vmem:[%s3 + $0x10] sm:$0xff]
    %v213 = vld [vmem:[%s3 + $0x18] sm:$0xff]
    %v214 = vld [vmem:[%s3 + $0x20] sm:$0xff]
    %v215 = vld [vmem:[%s3 + $0x28] sm:$0xff]
    %v216 = vld [vmem:[%s3 + $0x30] sm:$0xff]
    %v217 = vld [vmem:[%s3 + $0x38] sm:$0xff]
    %vm218 = vcmask 523264
    %v220 = vsel %vm218, %v206, 0
    %v223 = vsel %vm218, %v207, 0
    %225 = vmatprep.subr.mxu0 0.0
    %226 = vmatpush1.msra.mxu0 %v210
    %227 = vmatprep.subr.mxu0 0.0
    %228 = vmatpush1.msra.mxu0 %v211
    %229 = vmatprep.subr.mxu0 0.0
    %230 = vmatpush1.msra.mxu0 %v212
    %231 = vmatprep.subr.mxu0 0.0
    %232 = vmatpush1.msra.mxu0 %v213
    %233 = vmatprep.subr.mxu0 0.0
    %234 = vmatpush1.msra.mxu0 %v214
    %235 = vmatprep.subr.mxu0 0.0
    %236 = vmatpush1.msra.mxu0 %v215
    %237 = vmatprep.subr.mxu0 0.0
    %238 = vmatpush1.msra.mxu0 %v216
    %239 = vmatprep.subr.mxu0 0.0
    %240 = vmatpush1.msra.mxu0 %v217
    %241 = vmatprep.subr.mxu0 0.0
    %242 = vmatpush1.msra.mxu0 0.0
    %243 = vmatprep.subr.mxu0 0.0
    %244 = vmatpush1.msra.mxu0 0.0
    %245 = vmatprep.subr.mxu0 0.0
    %246 = vmatpush1.msra.mxu0 0.0
    %247 = vmatprep.subr.mxu0 0.0
    %248 = vmatpush1.msra.mxu0 0.0
    %249 = vmatprep.subr.mxu0 0.0
    %250 = vmatpush1.msra.mxu0 0.0
    %251 = vmatprep.subr.mxu0 0.0
    %252 = vmatpush1.msra.mxu0 0.0
    %253 = vmatprep.subr.mxu0 0.0
    %254 = vmatpush1.msra.mxu0 0.0
    %255 = vmatprep.subr.mxu0 0.0
    %256 = vmatpush1.msra.mxu0 0.0
    %257 = vmatprep.subr.mxu0 0.0
    %258 = vmatpush1.msra.mxu0 0.0
    %259 = vmatprep.subr.mxu0 0.0
    %260 = vmatpush1.msra.mxu0 0.0
    %261 = vmatprep.subr.mxu0 0.0
    %262 = vmatpush1.msra.mxu0 0.0
    %263 = vmatprep.subr.mxu0 0.0
    %264 = vmatpush1.msra.mxu0 0.0
    %265 = vmatprep.subr.mxu0 0.0
    %266 = vmatpush1.msra.mxu0 0.0
    %267 = vmatprep.subr.mxu0 0.0
    %268 = vmatpush1.msra.mxu0 0.0
    %269 = vmatprep.subr.mxu0 0.0
    %270 = vmatpush1.msra.mxu0 0.0
    %271 = vmatprep.subr.mxu0 0.0
    %272 = vmatpush1.msra.mxu0 0.0
    %273 = vmatprep.subr.mxu0 0.0
    %274 = vmatpush1.msra.mxu0 0.0
    %275 = vmatprep.subr.mxu0 0.0
    %276 = vmatpush1.msra.mxu0 0.0
    %277 = vmatprep.subr.mxu0 0.0
    %278 = vmatpush1.msra.mxu0 0.0
    %279 = vmatprep.subr.mxu0 0.0
    %280 = vmatpush1.msra.mxu0 0.0
    %281 = vmatprep.subr.mxu0 0.0
    %282 = vmatpush1.msra.mxu0 0.0
    %283 = vmatprep.subr.mxu0 0.0
    %284 = vmatpush1.msra.mxu0 0.0
    %285 = vmatprep.subr.mxu0 0.0
    %286 = vmatpush1.msra.mxu0 0.0
    %287 = vmatprep.subr.mxu0 0.0
    %288 = vmatpush1.msra.mxu0 0.0
    %289 = vmatprep.mubr.f32.mxu0 0.0
    %290 = vmatmul.mubr.f32.gmra.mrb[0].mxu0 %v220
    %v291 = vpop.f32.mrb[0].mxu0
    %v292 = vadd.f32 0.0, %v291
    %v293 = vpop.f32.mrb[0].mxu0
    %294 = vmatprep.mubr.f32.mxu0 0.0
    %295 = vmatmul.mubr.f32.gmra.mrb[0].mxu0 %v223
    %v296 = vpop.f32.mrb[0].mxu0
    %v297 = vadd.f32 0.0, %v296
    %v298 = vpop.f32.mrb[0].mxu0
    %299 = vdwg.mxu0
    %v300 = vadd.f32 %v208, %v292
    %v301 = vadd.f32 %v209, %v297
    %302 = vst.msk [vmem:[#allocation2] sm:$0xff] %vm31, %v300
    %303 = vst.msk [vmem:[#allocation2 + $0x8] sm:$0xff] %vm31, %v301
    // Predicated region
    $region22: #{tpu_custom_call.1} parent=1 // pred_check
      _
    $region23: #{tpu_custom_call.1} parent=1 // pred_check_branch
      %305 = sbr.rel (0) target = $region25
    $region24: #{tpu_custom_call.1} parent=1 // pred_region
      %s307 = ssub.s32 256, 256
      %308 = vsyncadd [#allocation3], %s307
      %s309 = sshll.u32 [#allocation2], 4
      %s310 = int_to_ptr.vmem [resolvable:$true] %s309
      %315 = dma.vmem_to_hbm [thread:$0]  %s310, 256, %s4, [#allocation3], 128, 128, 8
    $region25: #{tpu_custom_call.1} parent=1 // pred_fallthru
      _
    // Predicated region
    $region26: #{tpu_custom_call.1} parent=1 // pred_check
      _
    $region27: #{tpu_custom_call.1} parent=1 // pred_check_branch
      %317 = sbr.rel (0) target = $region29
    $region28: #{tpu_custom_call.1} parent=1 // pred_region
      %318 = dma.done [#allocation3], 256
    $region29: #{tpu_custom_call.1} parent=1 // pred_fallthru
      _
    %319 = vsyncpa [#allocation3], 1

</llo_original>
